<compile_context>
chip_gen: v5e
topology: v5e:2x2
jax: 0.10.0
libtpu: 0.0.40
codegen_flags: <defaults>
</compile_context>

<pallas_src>
import jax
import jax.numpy as jnp
from jax import lax
from jax.experimental import pallas as pl
from jax.experimental.pallas import tpu as pltpu


def rank_moco_loss(mem_pred, mem_gt, beta=1.0):
    """mem_pred, mem_gt: 1-D score vectors of identical length N."""
    del beta  # stored but unused in the reference forward pass
    n = mem_pred.shape[0]
    nf = jnp.float32(n)
    pred = mem_pred.astype(jnp.float32)
    gt = mem_gt.astype(jnp.float32)

    # ---- get_rank(mem_gt): exact rank, non-differentiable -> plain XLA ----
    pos = jnp.argsort(jnp.argsort(gt)).astype(jnp.float32)      # ascending position
    rank_gt = ((nf - pos) / nf).reshape(n, 1)

    # ---- scalar scale only (no big pre-scaled array written to HBM) --------
    # sigmoid(s*(xj-xi)) = 0.5*tanh(0.5*s*(xj-xi)) + 0.5, s = 6.8/std (unbiased).
    # NB: var == 0 (constant mem_pred) -> inf/NaN, matching the PyTorch ref.
    mean = jnp.mean(pred)
    var = jnp.sum((pred - mean) ** 2) / (nf - 1.0)
    scale = ((0.5 * 6.8) * lax.rsqrt(var)).reshape(1, 1)

    # ---- tiling ------------------------------------------------------------
    tile = n if n <= 256 else 256          # rows per grid step
    chunk = n if n <= 512 else 512         # lanes per in-kernel step
    # TODO(synk): pad + mask tail rows/cols for N not a multiple of tile/chunk.
    assert n % tile == 0 and n % chunk == 0, "N must be a multiple of tile/chunk"
    num_tiles = n // tile
    num_chunks = n // chunk

    def kernel(scale_ref, row_ref, col_ref, gt_ref, out_ref):
        # scale_ref : (1, 1)    SMEM  0.5 * 6.8 / std
        # row_ref   : (1, N)    VMEM  raw mem_pred, resident across row tiles
        # col_ref   : (TILE, 1) VMEM  this tile's rows of mem_pred
        # gt_ref    : (TILE, 1) VMEM  exact ranks of mem_gt for this tile
        # out_ref   : (1, 1)    SMEM  this tile's squared-error partial sum
        s = scale_ref[0, 0]
        col = col_ref[...] * s                               # (TILE, 1)

        if num_chunks == 1:
            t = jnp.tanh(row_ref[...] * s - col)             # (TILE, N)
            row_sum = jnp.sum(t, axis=1, keepdims=True)      # (TILE, 1)
        else:
            def body(c, acc):
                off = pl.multiple_of(c * chunk, chunk)
                row = row_ref[:, pl.ds(off, chunk)] * s      # (1, CHUNK)
                t = jnp.tanh(row - col)                      # (TILE, CHUNK)
                return acc + jnp.sum(t, axis=1, keepdims=True)
            row_sum = lax.fori_loop(0, num_chunks, body,
                                    jnp.zeros((tile, 1), jnp.float32),
                                    unroll=(num_chunks <= 8))

        # rank_pred[i] = (sum_{j!=i} sigmoid + 1) / N
        #             = (0.5 * sum_j tanh(d_ij) + 0.5*(N+1)) / N   (diag tanh = 0)
        inv_n = 1.0 / n
        rank_pred = row_sum * (0.5 * inv_n) + ((n + 1.0) * 0.5 * inv_n)
        diff = rank_pred - gt_ref[...]                       # (TILE, 1)
        out_ref[0, 0] = jnp.sum(diff * diff)

    # explicit VMEM budget with headroom (matters only at large N / on v7x)
    vmem_est = (2 * 4 * n                    # resident (1, N) row, double-buffered
                + 4 * tile * 128 * 4         # col + gt blocks, lane-padded, x2 buffers
                + 8 * tile * chunk * 4       # tanh / reduce temporaries headroom
                + (2 << 20))
    vmem_limit = int(min(max(vmem_est, 16 << 20), 56 << 20))

    partials = pl.pallas_call(
        kernel,
        out_shape=jax.ShapeDtypeStruct((num_tiles, 1), jnp.float32),
        grid=(num_tiles,),
        in_specs=[
            pl.BlockSpec(memory_space=pltpu.MemorySpace.SMEM),   # scale, whole array
            pl.BlockSpec((1, n), lambda i: (0, 0)),              # full row, resident
            pl.BlockSpec((tile, 1), lambda i: (i, 0)),           # this tile's rows (col)
            pl.BlockSpec((tile, 1), lambda i: (i, 0)),           # this tile's rank_gt
        ],
        out_specs=pl.BlockSpec((1, 1), lambda i: (i, 0),
                               memory_space=pltpu.MemorySpace.SMEM),
        compiler_params=pltpu.CompilerParams(
            dimension_semantics=("parallel",),                   # independent row tiles
            vmem_limit_bytes=vmem_limit),
    )(scale, pred.reshape(1, n), pred.reshape(n, 1), rank_gt)

    return jnp.sum(partials) / nf


def _reference(mem_pred, mem_gt):
    """Pure-JAX reference mirroring the PyTorch module."""
    n = mem_pred.shape[0]
    nf = jnp.float32(n)
    # get_rank(mem_gt)
    r1 = jnp.argsort(mem_gt)
    r2 = jnp.argsort(r1)
    rank_gt = (nf - r2.astype(jnp.float32)) / nf
    # sorter_exact(mem_pred)
    std = jnp.sqrt(jnp.sum((mem_pred - jnp.mean(mem_pred)) ** 2) / (nf - 1.0))
    scale = 6.8 / std
    diff = mem_pred[None, :] - mem_pred[:, None]            # [i, j] = x[j]-x[i]
    sig = jax.nn.sigmoid(diff * scale)
    sig = sig * (1.0 - jnp.eye(n, dtype=jnp.float32))
    rank_pred = (jnp.sum(sig, axis=1) + 1.0) / nf
    return jnp.mean((rank_pred - rank_gt) ** 2)


if __name__ == "__main__":
    key = jax.random.PRNGKey(0)
    k1, k2 = jax.random.split(key)
    N = 256  # matches SpearmanLoss('exa', 256, None) sequence length

    mem_pred = jax.random.normal(k1, (N,), dtype=jnp.float32)
    mem_gt = jax.random.uniform(k2, (N,), dtype=jnp.float32)

    loss = jax.block_until_ready(rank_moco_loss(mem_pred, mem_gt))
    ref = jax.block_until_ready(_reference(mem_pred, mem_gt))

    assert jnp.isfinite(loss), "non-finite loss"
    assert abs(float(loss) - float(ref)) < 1e-5, (float(loss), float(ref))
    print("KERNEL_OK")
</pallas_src>

<mosaic_0001>
module attributes {stable_mosaic.version = 11 : i64} {
  func.func @kernel(%arg0: i32, %arg1: memref<1x1xf32, #tpu.memory_space<smem>>, %arg2: memref<1x256xf32, #tpu.memory_space<vmem>>, %arg3: memref<256x1xf32, #tpu.memory_space<vmem>>, %arg4: memref<256x1xf32, #tpu.memory_space<vmem>>, %arg5: memref<1x1xf32, #tpu.memory_space<smem>>) attributes {dimension_semantics = [#tpu.dimension_semantics<parallel>], iteration_bounds = array<i64: 1>, scalar_prefetch = 0 : i64, scratch_operands = 0 : i64, tpu.core_type = #tpu.core_type<tc>, window_params = [{transform_indices = @transform_0, window_bounds = array<i64: 1, 1>}, {pipeline_mode = #tpu.pipeline_mode<synchronous>, transform_indices = @transform_1, window_bounds = array<i64: 1, 256>}, {transform_indices = @transform_2, window_bounds = array<i64: 256, 1>}, {transform_indices = @transform_3, window_bounds = array<i64: 256, 1>}, {transform_indices = @transform_4, window_bounds = array<i64: 1, 1>}]} {
    %c0 = arith.constant 0 : index
    %c0_0 = arith.constant 0 : index
    %0 = memref.load %arg1[%c0, %c0_0] : memref<1x1xf32, #tpu.memory_space<smem>>
    %c0_1 = arith.constant 0 : index
    %c0_2 = arith.constant 0 : index
    %1 = vector.load %arg3[%c0_1, %c0_2] : memref<256x1xf32, #tpu.memory_space<vmem>>, vector<256x1xf32>
    %2 = vector.broadcast %0 : f32 to vector<256x1xf32>
    %3 = arith.mulf %1, %2 : vector<256x1xf32>
    %c0_3 = arith.constant 0 : index
    %c0_4 = arith.constant 0 : index
    %4 = vector.load %arg2[%c0_3, %c0_4] : memref<1x256xf32, #tpu.memory_space<vmem>>, vector<1x256xf32>
    %5 = vector.broadcast %0 : f32 to vector<1x256xf32>
    %6 = arith.mulf %4, %5 : vector<1x256xf32>
    %7 = vector.broadcast %6 : vector<1x256xf32> to vector<256x256xf32>
    %8 = vector.broadcast %3 : vector<256x1xf32> to vector<256x256xf32>
    %9 = arith.subf %7, %8 : vector<256x256xf32>
    %10 = math.tanh %9 : vector<256x256xf32>
    %cst = arith.constant dense<0.000000e+00> : vector<256xf32>
    %11 = vector.multi_reduction <add>, %10, %cst [1] : vector<256x256xf32> to vector<256xf32>
    %12 = vector.shape_cast %11 : vector<256xf32> to vector<256x1xf32>
    %cst_5 = arith.constant 0.001953125 : f32
    %13 = vector.broadcast %cst_5 : f32 to vector<256x1xf32>
    %14 = arith.mulf %12, %13 : vector<256x1xf32>
    %cst_6 = arith.constant 0.501953125 : f32
    %15 = vector.broadcast %cst_6 : f32 to vector<256x1xf32>
    %16 = arith.addf %14, %15 : vector<256x1xf32>
    %c0_7 = arith.constant 0 : index
    %c0_8 = arith.constant 0 : index
    %17 = vector.load %arg4[%c0_7, %c0_8] : memref<256x1xf32, #tpu.memory_space<vmem>>, vector<256x1xf32>
    %18 = arith.subf %16, %17 : vector<256x1xf32>
    %19 = arith.mulf %18, %18 : vector<256x1xf32>
    %20 = vector.shape_cast %19 : vector<256x1xf32> to vector<1x256x1xf32>
    %cst_9 = arith.constant dense<0.000000e+00> : vector<1xf32>
    %21 = vector.multi_reduction <add>, %20, %cst_9 [1, 2] : vector<1x256x1xf32> to vector<1xf32>
    %22 = vector.shape_cast %21 : vector<1xf32> to vector<1x1x1xf32>
    %23 = vector.extract %22[0, 0, 0] : f32 from vector<1x1x1xf32>
    %c0_10 = arith.constant 0 : index
    %c0_11 = arith.constant 0 : index
    %24 = memref.load %arg5[%c0_10, %c0_11] : memref<1x1xf32, #tpu.memory_space<smem>>
    memref.store %23, %arg5[%c0_10, %c0_11] : memref<1x1xf32, #tpu.memory_space<smem>>
    return
  }
  func.func @transform_0(%arg0: i32) -> (i32, i32) {
    %c0_i32 = arith.constant 0 : i32
    %c0_i32_0 = arith.constant 0 : i32
    %c0_i32_1 = arith.constant 0 : i32
    return %c0_i32, %c0_i32_0 : i32, i32
  }
  func.func @transform_1(%arg0: i32) -> (i32, i32) {
    %c0_i32 = arith.constant 0 : i32
    %c0_i32_0 = arith.constant 0 : i32
    %c0_i32_1 = arith.constant 0 : i32
    return %c0_i32, %c0_i32_0 : i32, i32
  }
  func.func @transform_2(%arg0: i32) -> (i32, i32) {
    %c0_i32 = arith.constant 0 : i32
    %c0_i32_0 = arith.constant 0 : i32
    return %arg0, %c0_i32 : i32, i32
  }
  func.func @transform_3(%arg0: i32) -> (i32, i32) {
    %c0_i32 = arith.constant 0 : i32
    %c0_i32_0 = arith.constant 0 : i32
    return %arg0, %c0_i32 : i32, i32
  }
  func.func @transform_4(%arg0: i32) -> (i32, i32) {
    %c0_i32 = arith.constant 0 : i32
    %c0_i32_0 = arith.constant 0 : i32
    return %arg0, %c0_i32 : i32, i32
  }
}

</mosaic_0001>

<llo_original>
// kernel: tpu_custom_call.1
$region0: #{tpu_custom_call.1}
  #allocation0 [shape = 'u32[]', space=smem, size = 0x4, offset = 0x4, fixed_abs, tag = 'smem constant byte address 0x4 - core index']
  #allocation1 [shape = 'u32[72,128]{1,0:T(1,128)}', space=vmem, size = 0x9000, scoped, tag = 'internal scratch']
  #allocation2 [shape = 'f32[1,1]{1,0:T(1,128)S(6)}', space=smem, size = 0x200, scoped, tag = 'scoped memory for tpu_custom_call.1']
  %s0 = inlined_call_operand.<no memory space> [shape: f32[1,1], index: 0, kind: input, shape index: {}]
  %s1 = inlined_call_operand.vmem [shape: f32[1,256], index: 1, kind: input, shape index: {}]
  %s2 = inlined_call_operand.vmem [shape: f32[256,1], index: 2, kind: input, shape index: {}]
  %s3 = inlined_call_operand.vmem [shape: f32[256,1], index: 3, kind: input, shape index: {}]
  %s4 = inlined_call_operand.hbm [shape: f32[1,1], index: 4, kind: output, shape index: {}]
  %s5 = sld [smem:[#allocation0]]
  $region26: #{tpu_custom_call.1} parent=0
    _
  %s7 = ssub.s32 1, %s5
  %s8 = scalar_select 0, %s7, %s5
  %9 = sst [smem:[#allocation2]] %s0
  $region1: #{tpu_custom_call.1} parent=0
    #allocation3 [shape = 'u8[512]{0}', space=smem, size = 0x200, scoped, tag = 'output window, operand 0, single buffered']
    #allocation4 [shape = 's32[1]{0}', space=sflag, size = 0x4, scoped, tag = 'scoped memory for tpu_custom_call.1']
    %10 = vsyncpa [#allocation4], 0
    // Predicated region
    $region2: #{tpu_custom_call.1} parent=1 // pred_check
      _
    $region3: #{tpu_custom_call.1} parent=1 // pred_check_branch
      %12 = sbr.rel (0) target = $region5
    $region4: #{tpu_custom_call.1} parent=1 // pred_region
      _
    $region5: #{tpu_custom_call.1} parent=1 // pred_fallthru
      _
    // Predicated region
    $region6: #{tpu_custom_call.1} parent=1 // pred_check
      _
    $region7: #{tpu_custom_call.1} parent=1 // pred_check_branch
      %14 = sbr.rel (0) target = $region9
    $region8: #{tpu_custom_call.1} parent=1 // pred_region
      _
    $region9: #{tpu_custom_call.1} parent=1 // pred_fallthru
      _
    // Predicated region
    $region10: #{tpu_custom_call.1} parent=1 // pred_check
      _
    $region11: #{tpu_custom_call.1} parent=1 // pred_check_branch
      %16 = sbr.rel (0) target = $region13
    $region12: #{tpu_custom_call.1} parent=1 // pred_region
      _
    $region13: #{tpu_custom_call.1} parent=1 // pred_fallthru
      _
    // Predicated region
    $region14: #{tpu_custom_call.1} parent=1 // pred_check
      _
    $region15: #{tpu_custom_call.1} parent=1 // pred_check_branch
      %18 = sbr.rel (0) target = $region17
    $region16: #{tpu_custom_call.1} parent=1 // pred_region
      _
    $region17: #{tpu_custom_call.1} parent=1 // pred_fallthru
      _
    %s19 = sld [smem:[#allocation2]]
    %v20 = vld [vmem:[%s2] sm:$0xff]
    %v21 = vld [vmem:[%s2 + $0x8] sm:$0xff]
    %v22 = vld [vmem:[%s2 + $0x10] sm:$0xff]
    %v23 = vld [vmem:[%s2 + $0x18] sm:$0xff]
    %v24 = vld [vmem:[%s2 + $0x20] sm:$0xff]
    %v25 = vld [vmem:[%s2 + $0x28] sm:$0xff]
    %v26 = vld [vmem:[%s2 + $0x30] sm:$0xff]
    %v27 = vld [vmem:[%s2 + $0x38] sm:$0xff]
    %v28 = vld [vmem:[%s2 + $0x40] sm:$0xff]
    %v29 = vld [vmem:[%s2 + $0x48] sm:$0xff]
    %v30 = vld [vmem:[%s2 + $0x50] sm:$0xff]
    %v31 = vld [vmem:[%s2 + $0x58] sm:$0xff]
    %v32 = vld [vmem:[%s2 + $0x60] sm:$0xff]
    %v33 = vld [vmem:[%s2 + $0x68] sm:$0xff]
    %v34 = vld [vmem:[%s2 + $0x70] sm:$0xff]
    %v35 = vld [vmem:[%s2 + $0x78] sm:$0xff]
    %v36 = vld [vmem:[%s2 + $0x80] sm:$0xff]
    %v37 = vld [vmem:[%s2 + $0x88] sm:$0xff]
    %v38 = vld [vmem:[%s2 + $0x90] sm:$0xff]
    %v39 = vld [vmem:[%s2 + $0x98] sm:$0xff]
    %v40 = vld [vmem:[%s2 + $0xa0] sm:$0xff]
    %v41 = vld [vmem:[%s2 + $0xa8] sm:$0xff]
    %v42 = vld [vmem:[%s2 + $0xb0] sm:$0xff]
    %v43 = vld [vmem:[%s2 + $0xb8] sm:$0xff]
    %v44 = vld [vmem:[%s2 + $0xc0] sm:$0xff]
    %v45 = vld [vmem:[%s2 + $0xc8] sm:$0xff]
    %v46 = vld [vmem:[%s2 + $0xd0] sm:$0xff]
    %v47 = vld [vmem:[%s2 + $0xd8] sm:$0xff]
    %v48 = vld [vmem:[%s2 + $0xe0] sm:$0xff]
    %v49 = vld [vmem:[%s2 + $0xe8] sm:$0xff]
    %v50 = vld [vmem:[%s2 + $0xf0] sm:$0xff]
    %v51 = vld [vmem:[%s2 + $0xf8] sm:$0xff]
    %v52 = vstv %s19
    %v53 = vmul.f32 %v20, %v52
    %v54 = vmul.f32 %v21, %v52
    %v55 = vmul.f32 %v22, %v52
    %v56 = vmul.f32 %v23, %v52
    %v57 = vmul.f32 %v24, %v52
    %v58 = vmul.f32 %v25, %v52
    %v59 = vmul.f32 %v26, %v52
    %v60 = vmul.f32 %v27, %v52
    %v61 = vmul.f32 %v28, %v52
    %v62 = vmul.f32 %v29, %v52
    %v63 = vmul.f32 %v30, %v52
    %v64 = vmul.f32 %v31, %v52
    %v65 = vmul.f32 %v32, %v52
    %v66 = vmul.f32 %v33, %v52
    %v67 = vmul.f32 %v34, %v52
    %v68 = vmul.f32 %v35, %v52
    %v69 = vmul.f32 %v36, %v52
    %v70 = vmul.f32 %v37, %v52
    %v71 = vmul.f32 %v38, %v52
    %v72 = vmul.f32 %v39, %v52
    %v73 = vmul.f32 %v40, %v52
    %v74 = vmul.f32 %v41, %v52
    %v75 = vmul.f32 %v42, %v52
    %v76 = vmul.f32 %v43, %v52
    %v77 = vmul.f32 %v44, %v52
    %v78 = vmul.f32 %v45, %v52
    %v79 = vmul.f32 %v46, %v52
    %v80 = vmul.f32 %v47, %v52
    %v81 = vmul.f32 %v48, %v52
    %v82 = vmul.f32 %v49, %v52
    %v83 = vmul.f32 %v50, %v52
    %v84 = vmul.f32 %v51, %v52
    %v85 = vld [vmem:[%s1] sm:$0x3]
    %v86 = vmul.f32 %v85, %v52
    %v88 = vperm.slane %v86, 0
    %v89 = vperm.slane %v86, 1
    %93 = vset.pattern.permute.xlu0 0
    %94 = vperm.xlu0 %93, %v53
    %v95 = vpop.permute.xlu0 %94
    %98 = vset.pattern.permute.xlu0 0
    %99 = vperm.xlu0 %98, %v54
    %v100 = vpop.permute.xlu0 %99
    %103 = vset.pattern.permute.xlu0 0
    %104 = vperm.xlu0 %103, %v55
    %v105 = vpop.permute.xlu0 %104
    %108 = vset.pattern.permute.xlu0 0
    %109 = vperm.xlu0 %108, %v56
    %v110 = vpop.permute.xlu0 %109
    %113 = vset.pattern.permute.xlu0 0
    %114 = vperm.xlu0 %113, %v57
    %v115 = vpop.permute.xlu0 %114
    %118 = vset.pattern.permute.xlu0 0
    %119 = vperm.xlu0 %118, %v58
    %v120 = vpop.permute.xlu0 %119
    %123 = vset.pattern.permute.xlu0 0
    %124 = vperm.xlu0 %123, %v59
    %v125 = vpop.permute.xlu0 %124
    %128 = vset.pattern.permute.xlu0 0
    %129 = vperm.xlu0 %128, %v60
    %v130 = vpop.permute.xlu0 %129
    %133 = vset.pattern.permute.xlu0 0
    %134 = vperm.xlu0 %133, %v61
    %v135 = vpop.permute.xlu0 %134
    %138 = vset.pattern.permute.xlu0 0
    %139 = vperm.xlu0 %138, %v62
    %v140 = vpop.permute.xlu0 %139
    %143 = vset.pattern.permute.xlu0 0
    %144 = vperm.xlu0 %143, %v63
    %v145 = vpop.permute.xlu0 %144
    %148 = vset.pattern.permute.xlu0 0
    %149 = vperm.xlu0 %148, %v64
    %v150 = vpop.permute.xlu0 %149
    %153 = vset.pattern.permute.xlu0 0
    %154 = vperm.xlu0 %153, %v65
    %v155 = vpop.permute.xlu0 %154
    %158 = vset.pattern.permute.xlu0 0
    %159 = vperm.xlu0 %158, %v66
    %v160 = vpop.permute.xlu0 %159
    %163 = vset.pattern.permute.xlu0 0
    %164 = vperm.xlu0 %163, %v67
    %v165 = vpop.permute.xlu0 %164
    %168 = vset.pattern.permute.xlu0 0
    %169 = vperm.xlu0 %168, %v68
    %v170 = vpop.permute.xlu0 %169
    %173 = vset.pattern.permute.xlu0 0
    %174 = vperm.xlu0 %173, %v69
    %v175 = vpop.permute.xlu0 %174
    %178 = vset.pattern.permute.xlu0 0
    %179 = vperm.xlu0 %178, %v70
    %v180 = vpop.permute.xlu0 %179
    %183 = vset.pattern.permute.xlu0 0
    %184 = vperm.xlu0 %183, %v71
    %v185 = vpop.permute.xlu0 %184
    %188 = vset.pattern.permute.xlu0 0
    %189 = vperm.xlu0 %188, %v72
    %v190 = vpop.permute.xlu0 %189
    %193 = vset.pattern.permute.xlu0 0
    %194 = vperm.xlu0 %193, %v73
    %v195 = vpop.permute.xlu0 %194
    %198 = vset.pattern.permute.xlu0 0
    %199 = vperm.xlu0 %198, %v74
    %v200 = vpop.permute.xlu0 %199
    %203 = vset.pattern.permute.xlu0 0
    %204 = vperm.xlu0 %203, %v75
    %v205 = vpop.permute.xlu0 %204
    %208 = vset.pattern.permute.xlu0 0
    %209 = vperm.xlu0 %208, %v76
    %v210 = vpop.permute.xlu0 %209
    %213 = vset.pattern.permute.xlu0 0
    %214 = vperm.xlu0 %213, %v77
    %v215 = vpop.permute.xlu0 %214
    %218 = vset.pattern.permute.xlu0 0
    %219 = vperm.xlu0 %218, %v78
    %v220 = vpop.permute.xlu0 %219
    %223 = vset.pattern.permute.xlu0 0
    %224 = vperm.xlu0 %223, %v79
    %v225 = vpop.permute.xlu0 %224
    %228 = vset.pattern.permute.xlu0 0
    %229 = vperm.xlu0 %228, %v80
    %v230 = vpop.permute.xlu0 %229
    %233 = vset.pattern.permute.xlu0 0
    %234 = vperm.xlu0 %233, %v81
    %v235 = vpop.permute.xlu0 %234
    %238 = vset.pattern.permute.xlu0 0
    %239 = vperm.xlu0 %238, %v82
    %v240 = vpop.permute.xlu0 %239
    %243 = vset.pattern.permute.xlu0 0
    %244 = vperm.xlu0 %243, %v83
    %v245 = vpop.permute.xlu0 %244
    %248 = vset.pattern.permute.xlu0 0
    %249 = vperm.xlu0 %248, %v84
    %v250 = vpop.permute.xlu0 %249
    %v252 = vsub.f32 %v88, %v95
    %v253 = vsub.f32 %v89, %v95
    %v254 = vsub.f32 %v88, %v100
    %v255 = vsub.f32 %v89, %v100
    %v256 = vsub.f32 %v88, %v105
    %v257 = vsub.f32 %v89, %v105
    %v258 = vsub.f32 %v88, %v110
    %v259 = vsub.f32 %v89, %v110
    %v260 = vsub.f32 %v88, %v115
    %v261 = vsub.f32 %v89, %v115
    %v262 = vsub.f32 %v88, %v120
    %v263 = vsub.f32 %v89, %v120
    %v264 = vsub.f32 %v88, %v125
    %v265 = vsub.f32 %v89, %v125
    %v266 = vsub.f32 %v88, %v130
    %v267 = vsub.f32 %v89, %v130
    %v268 = vsub.f32 %v88, %v135
    %v269 = vsub.f32 %v89, %v135
    %v270 = vsub.f32 %v88, %v140
    %v271 = vsub.f32 %v89, %v140
    %v272 = vsub.f32 %v88, %v145
    %v273 = vsub.f32 %v89, %v145
    %v274 = vsub.f32 %v88, %v150
    %v275 = vsub.f32 %v89, %v150
    %v276 = vsub.f32 %v88, %v155
    %v277 = vsub.f32 %v89, %v155
    %v278 = vsub.f32 %v88, %v160
    %v279 = vsub.f32 %v89, %v160
    %v280 = vsub.f32 %v88, %v165
    %v281 = vsub.f32 %v89, %v165
    %v282 = vsub.f32 %v88, %v170
    %v283 = vsub.f32 %v89, %v170
    %v284 = vsub.f32 %v88, %v175
    %v285 = vsub.f32 %v89, %v175
    %v286 = vsub.f32 %v88, %v180
    %v287 = vsub.f32 %v89, %v180
    %v288 = vsub.f32 %v88, %v185
    %v289 = vsub.f32 %v89, %v185
    %v290 = vsub.f32 %v88, %v190
    %v291 = vsub.f32 %v89, %v190
    %v292 = vsub.f32 %v88, %v195
    %v293 = vsub.f32 %v89, %v195
    %v294 = vsub.f32 %v88, %v200
    %v295 = vsub.f32 %v89, %v200
    %v296 = vsub.f32 %v88, %v205
    %v297 = vsub.f32 %v89, %v205
    %v298 = vsub.f32 %v88, %v210
    %v299 = vsub.f32 %v89, %v210
    %v300 = vsub.f32 %v88, %v215
    %v301 = vsub.f32 %v89, %v215
    %v302 = vsub.f32 %v88, %v220
    %v303 = vsub.f32 %v89, %v220
    %v304 = vsub.f32 %v88, %v225
    %v305 = vsub.f32 %v89, %v225
    %v306 = vsub.f32 %v88, %v230
    %v307 = vsub.f32 %v89, %v230
    %v308 = vsub.f32 %v88, %v235
    %v309 = vsub.f32 %v89, %v235
    %v310 = vsub.f32 %v88, %v240
    %v311 = vsub.f32 %v89, %v240
    %v312 = vsub.f32 %v88, %v245
    %v313 = vsub.f32 %v89, %v245
    %v314 = vsub.f32 %v88, %v250
    %v315 = vsub.f32 %v89, %v250
    %v316 = vtanh.pop %v252
    %v317 = vtanh.pop %v253
    %v318 = vtanh.pop %v254
    %v319 = vtanh.pop %v255
    %v320 = vtanh.pop %v256
    %v321 = vtanh.pop %v257
    %v322 = vtanh.pop %v258
    %v323 = vtanh.pop %v259
    %v324 = vtanh.pop %v260
    %v325 = vtanh.pop %v261
    %v326 = vtanh.pop %v262
    %v327 = vtanh.pop %v263
    %v328 = vtanh.pop %v264
    %v329 = vtanh.pop %v265
    %v330 = vtanh.pop %v266
    %v331 = vtanh.pop %v267
    %v332 = vtanh.pop %v268
    %v333 = vtanh.pop %v269
    %v334 = vtanh.pop %v270
    %v335 = vtanh.pop %v271
    %v336 = vtanh.pop %v272
    %v337 = vtanh.pop %v273
    %v338 = vtanh.pop %v274
    %v339 = vtanh.pop %v275
    %v340 = vtanh.pop %v276
    %v341 = vtanh.pop %v277
    %v342 = vtanh.pop %v278
    %v343 = vtanh.pop %v279
    %v344 = vtanh.pop %v280
    %v345 = vtanh.pop %v281
    %v346 = vtanh.pop %v282
    %v347 = vtanh.pop %v283
    %v348 = vtanh.pop %v284
    %v349 = vtanh.pop %v285
    %v350 = vtanh.pop %v286
    %v351 = vtanh.pop %v287
    %v352 = vtanh.pop %v288
    %v353 = vtanh.pop %v289
    %v354 = vtanh.pop %v290
    %v355 = vtanh.pop %v291
    %v356 = vtanh.pop %v292
    %v357 = vtanh.pop %v293
    %v358 = vtanh.pop %v294
    %v359 = vtanh.pop %v295
    %v360 = vtanh.pop %v296
    %v361 = vtanh.pop %v297
    %v362 = vtanh.pop %v298
    %v363 = vtanh.pop %v299
    %v364 = vtanh.pop %v300
    %v365 = vtanh.pop %v301
    %v366 = vtanh.pop %v302
    %v367 = vtanh.pop %v303
    %v368 = vtanh.pop %v304
    %v369 = vtanh.pop %v305
    %v370 = vtanh.pop %v306
    %v371 = vtanh.pop %v307
    %v372 = vtanh.pop %v308
    %v373 = vtanh.pop %v309
    %v374 = vtanh.pop %v310
    %v375 = vtanh.pop %v311
    %v376 = vtanh.pop %v312
    %v377 = vtanh.pop %v313
    %v378 = vtanh.pop %v314
    %v379 = vtanh.pop %v315
    %v380 = vadd.f32 %v316, %v317
    %381 = vadd.xlane.f32.xlu0 %v380
    %v382 = vpop.xlane.xlu0 %381
    %v383 = vadd.f32 %v318, %v319
    %384 = vadd.xlane.f32.xlu0 %v383
    %v385 = vpop.xlane.xlu0 %384
    %v386 = vadd.f32 %v320, %v321
    %387 = vadd.xlane.f32.xlu0 %v386
    %v388 = vpop.xlane.xlu0 %387
    %v389 = vadd.f32 %v322, %v323
    %390 = vadd.xlane.f32.xlu0 %v389
    %v391 = vpop.xlane.xlu0 %390
    %v392 = vadd.f32 %v324, %v325
    %393 = vadd.xlane.f32.xlu0 %v392
    %v394 = vpop.xlane.xlu0 %393
    %v395 = vadd.f32 %v326, %v327
    %396 = vadd.xlane.f32.xlu0 %v395
    %v397 = vpop.xlane.xlu0 %396
    %v398 = vadd.f32 %v328, %v329
    %399 = vadd.xlane.f32.xlu0 %v398
    %v400 = vpop.xlane.xlu0 %399
    %v401 = vadd.f32 %v330, %v331
    %402 = vadd.xlane.f32.xlu0 %v401
    %v403 = vpop.xlane.xlu0 %402
    %v404 = vadd.f32 %v332, %v333
    %405 = vadd.xlane.f32.xlu0 %v404
    %v406 = vpop.xlane.xlu0 %405
    %v407 = vadd.f32 %v334, %v335
    %408 = vadd.xlane.f32.xlu0 %v407
    %v409 = vpop.xlane.xlu0 %408
    %v410 = vadd.f32 %v336, %v337
    %411 = vadd.xlane.f32.xlu0 %v410
    %v412 = vpop.xlane.xlu0 %411
    %v413 = vadd.f32 %v338, %v339
    %414 = vadd.xlane.f32.xlu0 %v413
    %v415 = vpop.xlane.xlu0 %414
    %v416 = vadd.f32 %v340, %v341
    %417 = vadd.xlane.f32.xlu0 %v416
    %v418 = vpop.xlane.xlu0 %417
    %v419 = vadd.f32 %v342, %v343
    %420 = vadd.xlane.f32.xlu0 %v419
    %v421 = vpop.xlane.xlu0 %420
    %v422 = vadd.f32 %v344, %v345
    %423 = vadd.xlane.f32.xlu0 %v422
    %v424 = vpop.xlane.xlu0 %423
    %v425 = vadd.f32 %v346, %v347
    %426 = vadd.xlane.f32.xlu0 %v425
    %v427 = vpop.xlane.xlu0 %426
    %v428 = vadd.f32 %v348, %v349
    %429 = vadd.xlane.f32.xlu0 %v428
    %v430 = vpop.xlane.xlu0 %429
    %v431 = vadd.f32 %v350, %v351
    %432 = vadd.xlane.f32.xlu0 %v431
    %v433 = vpop.xlane.xlu0 %432
    %v434 = vadd.f32 %v352, %v353
    %435 = vadd.xlane.f32.xlu0 %v434
    %v436 = vpop.xlane.xlu0 %435
    %v437 = vadd.f32 %v354, %v355
    %438 = vadd.xlane.f32.xlu0 %v437
    %v439 = vpop.xlane.xlu0 %438
    %v440 = vadd.f32 %v356, %v357
    %441 = vadd.xlane.f32.xlu0 %v440
    %v442 = vpop.xlane.xlu0 %441
    %v443 = vadd.f32 %v358, %v359
    %444 = vadd.xlane.f32.xlu0 %v443
    %v445 = vpop.xlane.xlu0 %444
    %v446 = vadd.f32 %v360, %v361
    %447 = vadd.xlane.f32.xlu0 %v446
    %v448 = vpop.xlane.xlu0 %447
    %v449 = vadd.f32 %v362, %v363
    %450 = vadd.xlane.f32.xlu0 %v449
    %v451 = vpop.xlane.xlu0 %450
    %v452 = vadd.f32 %v364, %v365
    %453 = vadd.xlane.f32.xlu0 %v452
    %v454 = vpop.xlane.xlu0 %453
    %v455 = vadd.f32 %v366, %v367
    %456 = vadd.xlane.f32.xlu0 %v455
    %v457 = vpop.xlane.xlu0 %456
    %v458 = vadd.f32 %v368, %v369
    %459 = vadd.xlane.f32.xlu0 %v458
    %v460 = vpop.xlane.xlu0 %459
    %v461 = vadd.f32 %v370, %v371
    %462 = vadd.xlane.f32.xlu0 %v461
    %v463 = vpop.xlane.xlu0 %462
    %v464 = vadd.f32 %v372, %v373
    %465 = vadd.xlane.f32.xlu0 %v464
    %v466 = vpop.xlane.xlu0 %465
    %v467 = vadd.f32 %v374, %v375
    %468 = vadd.xlane.f32.xlu0 %v467
    %v469 = vpop.xlane.xlu0 %468
    %v470 = vadd.f32 %v376, %v377
    %471 = vadd.xlane.f32.xlu0 %v470
    %v472 = vpop.xlane.xlu0 %471
    %v473 = vadd.f32 %v378, %v379
    %474 = vadd.xlane.f32.xlu0 %v473
    %v475 = vpop.xlane.xlu0 %474
    %v476 = vmul.f32 %v382, 0.001953125
    %v477 = vmul.f32 %v385, 0.001953125
    %v478 = vmul.f32 %v388, 0.001953125
    %v479 = vmul.f32 %v391, 0.001953125
    %v480 = vmul.f32 %v394, 0.001953125
    %v481 = vmul.f32 %v397, 0.001953125
    %v482 = vmul.f32 %v400, 0.001953125
    %v483 = vmul.f32 %v403, 0.001953125
    %v484 = vmul.f32 %v406, 0.001953125
    %v485 = vmul.f32 %v409, 0.001953125
    %v486 = vmul.f32 %v412, 0.001953125
    %v487 = vmul.f32 %v415, 0.001953125
    %v488 = vmul.f32 %v418, 0.001953125
    %v489 = vmul.f32 %v421, 0.001953125
    %v490 = vmul.f32 %v424, 0.001953125
    %v491 = vmul.f32 %v427, 0.001953125
    %v492 = vmul.f32 %v430, 0.001953125
    %v493 = vmul.f32 %v433, 0.001953125
    %v494 = vmul.f32 %v436, 0.001953125
    %v495 = vmul.f32 %v439, 0.001953125
    %v496 = vmul.f32 %v442, 0.001953125
    %v497 = vmul.f32 %v445, 0.001953125
    %v498 = vmul.f32 %v448, 0.001953125
    %v499 = vmul.f32 %v451, 0.001953125
    %v500 = vmul.f32 %v454, 0.001953125
    %v501 = vmul.f32 %v457, 0.001953125
    %v502 = vmul.f32 %v460, 0.001953125
    %v503 = vmul.f32 %v463, 0.001953125
    %v504 = vmul.f32 %v466, 0.001953125
    %v505 = vmul.f32 %v469, 0.001953125
    %v506 = vmul.f32 %v472, 0.001953125
    %v507 = vmul.f32 %v475, 0.001953125
    %v508 = vadd.f32 %v476, 0.5019531
    %v509 = vadd.f32 %v477, 0.5019531
    %v510 = vadd.f32 %v478, 0.5019531
    %v511 = vadd.f32 %v479, 0.5019531
    %v512 = vadd.f32 %v480, 0.5019531
    %v513 = vadd.f32 %v481, 0.5019531
    %v514 = vadd.f32 %v482, 0.5019531
    %v515 = vadd.f32 %v483, 0.5019531
    %v516 = vadd.f32 %v484, 0.5019531
    %v517 = vadd.f32 %v485, 0.5019531
    %v518 = vadd.f32 %v486, 0.5019531
    %v519 = vadd.f32 %v487, 0.5019531
    %v520 = vadd.f32 %v488, 0.5019531
    %v521 = vadd.f32 %v489, 0.5019531
    %v522 = vadd.f32 %v490, 0.5019531
    %v523 = vadd.f32 %v491, 0.5019531
    %v524 = vadd.f32 %v492, 0.5019531
    %v525 = vadd.f32 %v493, 0.5019531
    %v526 = vadd.f32 %v494, 0.5019531
    %v527 = vadd.f32 %v495, 0.5019531
    %v528 = vadd.f32 %v496, 0.5019531
    %v529 = vadd.f32 %v497, 0.5019531
    %v530 = vadd.f32 %v498, 0.5019531
    %v531 = vadd.f32 %v499, 0.5019531
    %v532 = vadd.f32 %v500, 0.5019531
    %v533 = vadd.f32 %v501, 0.5019531
    %v534 = vadd.f32 %v502, 0.5019531
    %v535 = vadd.f32 %v503, 0.5019531
    %v536 = vadd.f32 %v504, 0.5019531
    %v537 = vadd.f32 %v505, 0.5019531
    %v538 = vadd.f32 %v506, 0.5019531
    %v539 = vadd.f32 %v507, 0.5019531
    %v540 = vld [vmem:[%s3] sm:$0xff]
    %v541 = vld [vmem:[%s3 + $0x8] sm:$0xff]
    %v542 = vld [vmem:[%s3 + $0x10] sm:$0xff]
    %v543 = vld [vmem:[%s3 + $0x18] sm:$0xff]
    %v544 = vld [vmem:[%s3 + $0x20] sm:$0xff]
    %v545 = vld [vmem:[%s3 + $0x28] sm:$0xff]
    %v546 = vld [vmem:[%s3 + $0x30] sm:$0xff]
    %v547 = vld [vmem:[%s3 + $0x38] sm:$0xff]
    %v548 = vld [vmem:[%s3 + $0x40] sm:$0xff]
    %v549 = vld [vmem:[%s3 + $0x48] sm:$0xff]
    %v550 = vld [vmem:[%s3 + $0x50] sm:$0xff]
    %v551 = vld [vmem:[%s3 + $0x58] sm:$0xff]
    %v552 = vld [vmem:[%s3 + $0x60] sm:$0xff]
    %v553 = vld [vmem:[%s3 + $0x68] sm:$0xff]
    %v554 = vld [vmem:[%s3 + $0x70] sm:$0xff]
    %v555 = vld [vmem:[%s3 + $0x78] sm:$0xff]
    %v556 = vld [vmem:[%s3 + $0x80] sm:$0xff]
    %v557 = vld [vmem:[%s3 + $0x88] sm:$0xff]
    %v558 = vld [vmem:[%s3 + $0x90] sm:$0xff]
    %v559 = vld [vmem:[%s3 + $0x98] sm:$0xff]
    %v560 = vld [vmem:[%s3 + $0xa0] sm:$0xff]
    %v561 = vld [vmem:[%s3 + $0xa8] sm:$0xff]
    %v562 = vld [vmem:[%s3 + $0xb0] sm:$0xff]
    %v563 = vld [vmem:[%s3 + $0xb8] sm:$0xff]
    %v564 = vld [vmem:[%s3 + $0xc0] sm:$0xff]
    %v565 = vld [vmem:[%s3 + $0xc8] sm:$0xff]
    %v566 = vld [vmem:[%s3 + $0xd0] sm:$0xff]
    %v567 = vld [vmem:[%s3 + $0xd8] sm:$0xff]
    %v568 = vld [vmem:[%s3 + $0xe0] sm:$0xff]
    %v569 = vld [vmem:[%s3 + $0xe8] sm:$0xff]
    %v570 = vld [vmem:[%s3 + $0xf0] sm:$0xff]
    %v571 = vld [vmem:[%s3 + $0xf8] sm:$0xff]
    %v572 = vsub.f32 %v508, %v540
    %v573 = vsub.f32 %v509, %v541
    %v574 = vsub.f32 %v510, %v542
    %v575 = vsub.f32 %v511, %v543
    %v576 = vsub.f32 %v512, %v544
    %v577 = vsub.f32 %v513, %v545
    %v578 = vsub.f32 %v514, %v546
    %v579 = vsub.f32 %v515, %v547
    %v580 = vsub.f32 %v516, %v548
    %v581 = vsub.f32 %v517, %v549
    %v582 = vsub.f32 %v518, %v550
    %v583 = vsub.f32 %v519, %v551
    %v584 = vsub.f32 %v520, %v552
    %v585 = vsub.f32 %v521, %v553
    %v586 = vsub.f32 %v522, %v554
    %v587 = vsub.f32 %v523, %v555
    %v588 = vsub.f32 %v524, %v556
    %v589 = vsub.f32 %v525, %v557
    %v590 = vsub.f32 %v526, %v558
    %v591 = vsub.f32 %v527, %v559
    %v592 = vsub.f32 %v528, %v560
    %v593 = vsub.f32 %v529, %v561
    %v594 = vsub.f32 %v530, %v562
    %v595 = vsub.f32 %v531, %v563
    %v596 = vsub.f32 %v532, %v564
    %v597 = vsub.f32 %v533, %v565
    %v598 = vsub.f32 %v534, %v566
    %v599 = vsub.f32 %v535, %v567
    %v600 = vsub.f32 %v536, %v568
    %v601 = vsub.f32 %v537, %v569
    %v602 = vsub.f32 %v538, %v570
    %v603 = vsub.f32 %v539, %v571
    %v604 = vmul.f32 %v572, %v572
    %v605 = vmul.f32 %v573, %v573
    %v606 = vmul.f32 %v574, %v574
    %v607 = vmul.f32 %v575, %v575
    %v608 = vmul.f32 %v576, %v576
    %v609 = vmul.f32 %v577, %v577
    %v610 = vmul.f32 %v578, %v578
    %v611 = vmul.f32 %v579, %v579
    %v612 = vmul.f32 %v580, %v580
    %v613 = vmul.f32 %v581, %v581
    %v614 = vmul.f32 %v582, %v582
    %v615 = vmul.f32 %v583, %v583
    %v616 = vmul.f32 %v584, %v584
    %v617 = vmul.f32 %v585, %v585
    %v618 = vmul.f32 %v586, %v586
    %v619 = vmul.f32 %v587, %v587
    %v620 = vmul.f32 %v588, %v588
    %v621 = vmul.f32 %v589, %v589
    %v622 = vmul.f32 %v590, %v590
    %v623 = vmul.f32 %v591, %v591
    %v624 = vmul.f32 %v592, %v592
    %v625 = vmul.f32 %v593, %v593
    %v626 = vmul.f32 %v594, %v594
    %v627 = vmul.f32 %v595, %v595
    %v628 = vmul.f32 %v596, %v596
    %v629 = vmul.f32 %v597, %v597
    %v630 = vmul.f32 %v598, %v598
    %v631 = vmul.f32 %v599, %v599
    %v632 = vmul.f32 %v600, %v600
    %v633 = vmul.f32 %v601, %v601
    %v634 = vmul.f32 %v602, %v602
    %v635 = vmul.f32 %v603, %v603
    %vm636 = vcmask 7168
    %v637 = vsel %vm636, %v604, 0.0
    %v638 = vsel %vm636, %v605, 0.0
    %v639 = vadd.f32 %v637, %v638
    %v640 = vsel %vm636, %v606, 0.0
    %v641 = vadd.f32 %v639, %v640
    %v642 = vsel %vm636, %v607, 0.0
    %v643 = vadd.f32 %v641, %v642
    %v644 = vsel %vm636, %v608, 0.0
    %v645 = vadd.f32 %v643, %v644
    %v646 = vsel %vm636, %v609, 0.0
    %v647 = vadd.f32 %v645, %v646
    %v648 = vsel %vm636, %v610, 0.0
    %v649 = vadd.f32 %v647, %v648
    %v650 = vsel %vm636, %v611, 0.0
    %v651 = vadd.f32 %v649, %v650
    %v652 = vsel %vm636, %v612, 0.0
    %v653 = vadd.f32 %v651, %v652
    %v654 = vsel %vm636, %v613, 0.0
    %v655 = vadd.f32 %v653, %v654
    %v656 = vsel %vm636, %v614, 0.0
    %v657 = vadd.f32 %v655, %v656
    %v658 = vsel %vm636, %v615, 0.0
    %v659 = vadd.f32 %v657, %v658
    %v660 = vsel %vm636, %v616, 0.0
    %v661 = vadd.f32 %v659, %v660
    %v662 = vsel %vm636, %v617, 0.0
    %v663 = vadd.f32 %v661, %v662
    %v664 = vsel %vm636, %v618, 0.0
    %v665 = vadd.f32 %v663, %v664
    %v666 = vsel %vm636, %v619, 0.0
    %v667 = vadd.f32 %v665, %v666
    %v668 = vsel %vm636, %v620, 0.0
    %v669 = vadd.f32 %v667, %v668
    %v670 = vsel %vm636, %v621, 0.0
    %v671 = vadd.f32 %v669, %v670
    %v672 = vsel %vm636, %v622, 0.0
    %v673 = vadd.f32 %v671, %v672
    %v674 = vsel %vm636, %v623, 0.0
    %v675 = vadd.f32 %v673, %v674
    %v676 = vsel %vm636, %v624, 0.0
    %v677 = vadd.f32 %v675, %v676
    %v678 = vsel %vm636, %v625, 0.0
    %v679 = vadd.f32 %v677, %v678
    %v680 = vsel %vm636, %v626, 0.0
    %v681 = vadd.f32 %v679, %v680
    %v682 = vsel %vm636, %v627, 0.0
    %v683 = vadd.f32 %v681, %v682
    %v684 = vsel %vm636, %v628, 0.0
    %v685 = vadd.f32 %v683, %v684
    %v686 = vsel %vm636, %v629, 0.0
    %v687 = vadd.f32 %v685, %v686
    %v688 = vsel %vm636, %v630, 0.0
    %v689 = vadd.f32 %v687, %v688
    %v690 = vsel %vm636, %v631, 0.0
    %v691 = vadd.f32 %v689, %v690
    %v692 = vsel %vm636, %v632, 0.0
    %v693 = vadd.f32 %v691, %v692
    %v694 = vsel %vm636, %v633, 0.0
    %v695 = vadd.f32 %v693, %v694
    %v696 = vsel %vm636, %v634, 0.0
    %v697 = vadd.f32 %v695, %v696
    %v698 = vsel %vm636, %v635, 0.0
    %v699 = vadd.f32 %v697, %v698
    %700 = vadd.xlane.f32.xlu0 %v699
    %v701 = vpop.xlane.xlu0 %700
    %v702 = vrot.slane %v701, 4
    %v703 = vadd.f32 %v701, %v702
    %v704 = vrot.slane %v703, 2
    %v705 = vadd.f32 %v703, %v704
    %v706 = vrot.slane %v705, 1
    %v707 = vadd.f32 %v705, %v706
    %s708 = vtos %v707
    %s709 = scalar_lea.smem [#allocation3], 0
    %710 = sst [smem:[%s709]] %s708
    // Predicated region
    $region18: #{tpu_custom_call.1} parent=1 // pred_check
      _
    $region19: #{tpu_custom_call.1} parent=1 // pred_check_branch
      %712 = sbr.rel (0) target = $region21
    $region20: #{tpu_custom_call.1} parent=1 // pred_region
      %714 = vsyncadd [#allocation4], 0
      %s716 = sshll.u32 %s4, 4
      %s717 = int_to_ptr.hbm [resolvable:$true] %s716
      %719 = dma.smem_to_hbm [#allocation3], 16, %s717, [#allocation4]
    $region21: #{tpu_custom_call.1} parent=1 // pred_fallthru
      _
    // Predicated region
    $region22: #{tpu_custom_call.1} parent=1 // pred_check
      _
    $region23: #{tpu_custom_call.1} parent=1 // pred_check_branch
      %721 = sbr.rel (0) target = $region25
    $region24: #{tpu_custom_call.1} parent=1 // pred_region
      %723 = dma.done [#allocation4], 16
    $region25: #{tpu_custom_call.1} parent=1 // pred_fallthru
      _
    %724 = sfence
    %725 = vsyncpa [#allocation4], 1

</llo_original>
